<compile_context>
chip_gen: v6e
topology: v6e:2x2x1
jax: 0.10.0
libtpu: 0.0.40
codegen_flags: <defaults>
</compile_context>

<pallas_src>
import functools

import jax
import jax.numpy as jnp
from jax.experimental import pallas as pl
from jax.experimental.pallas import tpu as pltpu

NUM_CLASSES = 32
EPSILON = 0.1


def _round_up(x, m):
    return ((x + m - 1) // m) * m


def _ce_ls_kernel(*refs, epsilon, num_classes, pack, tile_rows, r_valid,
                  need_mask, mxu_onehot):
    """One grid step: writes an (8, L) partial sum of loss contributions."""
    K = num_classes
    P = pack

    x_ref, t_ref = refs[0], refs[1]
    idx = 2
    sbd_ref = None
    bmat_ref = None
    if P > 1:
        sbd_ref = refs[idx]
        idx += 1
    if mxu_onehot:
        bmat_ref = refs[idx]
        idx += 1
    out_ref = refs[idx]

    i = pl.program_id(0)
    x = x_ref[...].astype(jnp.float32)                  # (T, L)
    T, L = x.shape

    # ---- logsumexp per original row (= per group of K lanes) ---------------
    # Stabilized by the shared per-packed-row max (an upper bound of every
    # group max).  Assumes the P rows sharing a packed row have logits within
    # ~80 of each other (true for sane logits); otherwise use pack=1.
    m = jnp.max(x, axis=-1, keepdims=True)              # (T, 1)
    e = jnp.exp(x - m)                                  # (T, L), EUP
    if P > 1:
        # Segmented per-group sums, broadcast back to every lane of the group,
        # via a block-diagonal 0/1 matrix on the (mostly idle) MXU.
        # hi + lo bf16 split keeps ~f32 accuracy.
        e_hi = e.astype(jnp.bfloat16)
        e_lo = (e - e_hi.astype(jnp.float32)).astype(jnp.bfloat16)
        sbd = sbd_ref[...]
        gs = (jnp.dot(e_hi, sbd, preferred_element_type=jnp.float32) +
              jnp.dot(e_lo, sbd, preferred_element_type=jnp.float32))
    else:
        gs = jnp.sum(e, axis=-1, keepdims=True)         # (T, 1)
    lse = m + jnp.log(gs)                               # lse of the row owning each lane
    # TODO(synk-perf): on v7x the (T, L)-wide log could be shrunk ~16x by
    # XLU-compacting a narrow (T, P) gs before the log; skipped here because
    # the transpose/compaction lowering is the risky part.

    # ---- target-selected logits (one-hot part of the smoothed labels) ------
    lane = jax.lax.broadcasted_iota(jnp.int32, (T, L), 1)
    if mxu_onehot:
        # Broadcast each group's target lane index across its K lanes with one
        # extra tiny-contraction MXU pass (values < 128 are exact in bf16),
        # then a single compare + select.
        t_bcast = jnp.dot(t_ref[...], bmat_ref[...],
                          preferred_element_type=jnp.float32)      # (T, L)
        is_tgt = lane.astype(jnp.float32) == t_bcast
    else:
        # v5e-friendly boolean fold: P compares OR'ed together, one select.
        tl = t_ref[...]
        is_tgt = None
        for g in range(P):                               # tiny static constant
            tg = tl[:, g:g + 1].astype(jnp.int32)        # (T, 1)
            eq = lane == tg
            is_tgt = eq if is_tgt is None else (is_tgt | eq)
    tgt_x = jnp.where(is_tgt, x, 0.0)

    # Summing lse/K over the K lanes of a group yields exactly one lse per row:
    #   loss_row = lse_row - (eps/K) * sum_c x_c - (1-eps) * x_target
    contrib = (1.0 / K) * lse - (epsilon / K) * x - (1.0 - epsilon) * tgt_x

    def _reduce(c):
        # (T, L) -> (8, L) partial sums: pure vector adds, no cross-lane work;
        # the final tiny reduction happens once, outside the kernel.
        out_ref[...] = jnp.sum(c.reshape(T // 8, 8, L), axis=0)

    if need_mask:
        last = pl.num_programs(0) - 1

        @pl.when(i == last)                              # mask only the ragged tile
        def _():
            sub = jax.lax.broadcasted_iota(jnp.int32, (T, L), 0)
            prow = i * tile_rows + sub                   # packed-row index
            _reduce(jnp.where(prow < r_valid, contrib, 0.0))

        @pl.when(i != last)
        def _():
            _reduce(contrib)
    else:
        _reduce(contrib)


def _tail_loss_sum(x, t, K, eps):
    """Loss sum (not mean) for the <= P-1 rows not covered by the kernel."""
    x = x.astype(jnp.float32)
    lse = jax.scipy.special.logsumexp(x, axis=1)
    picked = jnp.take_along_axis(x, t[:, None], axis=1)[:, 0]
    return (jnp.sum(lse) - (eps / K) * jnp.sum(x)
            - (1.0 - eps) * jnp.sum(picked))


def _default_mxu_onehot():
    # The extra target-broadcast MXU pass pays off on v6e/v7x (huge MXU slack);
    # on v5e (197 TF/s MXU) and older/unknown chips use the boolean fold.
    try:
        kind = jax.devices()[0].device_kind.lower()
    except Exception:
        return False
    return ("v6" in kind) or ("v7" in kind)


def cross_entropy_label_smooth(inputs, targets, *, num_classes=None,
                               epsilon=EPSILON, max_tile_rows=2048,
                               mxu_onehot=None):
    """Label-smoothed cross entropy.

    inputs : (B, K) float logits (float32 or bfloat16; bf16 halves HBM reads).
    targets: (B,)   integer class labels.
    Returns the scalar float32 loss, identical to the PyTorch module.
    """
    B, K = inputs.shape
    if num_classes is None:
        num_classes = K
    assert num_classes == K
    if mxu_onehot is None:
        mxu_onehot = _default_mxu_onehot()
    eps = float(epsilon)

    targets = targets.astype(jnp.int32)

    # Lane packing: P consecutive rows per 128-lane register row (free reshape).
    P = (128 // K) if (K <= 128 and 128 % K == 0) else 1
    L = P * K
    R = B // P                        # packed rows handled by the kernel
    B_main = R * P

    total = jnp.float32(0.0)

    if R > 0:
        # Aligned prefix only -- no full-array pad (a pad is a full extra HBM
        # read+write of x); the <= P-1 leftover rows use a tiny XLA path below.
        x_packed = inputs[:B_main].reshape(R, L)

        # Absolute lane index of each row's target inside its packed row
        # (values < 128, exact in bf16), padded to Pp columns so the optional
        # MXU broadcast has a clean (Pp, L) rhs.
        Pp = max(P, 16)
        t_lane = (targets[:B_main].reshape(R, P)
                  + (jnp.arange(P, dtype=jnp.int32) * K)[None, :]
                  ).astype(jnp.bfloat16)
        if Pp > P:
            t_lane = jnp.concatenate(
                [t_lane, jnp.full((R, Pp - P), -1.0, jnp.bfloat16)], axis=1)

        # Tile sizing: big tiles amortize per-step overhead, but keep >= 4 grid
        # steps when possible so both v7x TensorCores stay busy.
        cap = max(16, (int(max_tile_rows) // 16) * 16)
        tile = min(cap, _round_up(max(1, pl.cdiv(R, 4)), 16))
        grid = pl.cdiv(R, tile)
        need_mask = (grid * tile != R)

        in_specs = [
            pl.BlockSpec((tile, L), lambda i: (i, 0)),
            # Note: this small block is still lane-padded in VMEM; a (P, tile)
            # transposed layout would be denser but needs an in-kernel
            # cross-lane expansion, so it is not used here.
            pl.BlockSpec((tile, Pp), lambda i: (i, 0)),
        ]
        operands = [x_packed, t_lane]

        if P > 1:
            # Block-diagonal 0/1 matrix for the segmented per-group softmax
            # sums; passed in (constant index_map) so it is fetched once and
            # never rebuilt per grid step.
            grp = jnp.arange(L, dtype=jnp.int32) // K
            s_bd = (grp[:, None] == grp[None, :]).astype(jnp.bfloat16)
            in_specs.append(pl.BlockSpec((L, L), lambda i: (0, 0)))
            operands.append(s_bd)

        if mxu_onehot:
            # (Pp, L) broadcast matrix: row g has ones on group g's K lanes.
            rows = jnp.arange(Pp, dtype=jnp.int32)[:, None]
            cols = jnp.arange(L, dtype=jnp.int32)[None, :] // K
            bmat = (rows == cols).astype(jnp.bfloat16)
            in_specs.append(pl.BlockSpec((Pp, L), lambda i: (0, 0)))
            operands.append(bmat)

        kernel = functools.partial(
            _ce_ls_kernel, epsilon=eps, num_classes=K, pack=P,
            tile_rows=tile, r_valid=R, need_mask=need_mask,
            mxu_onehot=bool(mxu_onehot))

        partials = pl.pallas_call(
            kernel,
            out_shape=jax.ShapeDtypeStruct((grid * 8, L), jnp.float32),
            grid_spec=pltpu.PrefetchScalarGridSpec(
                num_scalar_prefetch=0,
                grid=(grid,),
                in_specs=in_specs,
                out_specs=pl.BlockSpec((8, L), lambda i: (i, 0)),
            ),
            compiler_params=pltpu.CompilerParams(
                # Each grid step owns its (8, L) output block -> fully parallel
                # (splits across both TensorCores on v7x).
                dimension_semantics=("parallel",),
                vmem_limit_bytes=32 * 1024 * 1024,
            ),
        )(*operands)

        total = total + jnp.sum(partials)

    if B_main < B:                    # <= P-1 leftover rows: tiny XLA path
        total = total + _tail_loss_sum(inputs[B_main:], targets[B_main:], K, eps)

    return total / jnp.float32(B)


def _reference(inputs, targets, num_classes, epsilon=EPSILON):
    log_probs = jax.nn.log_softmax(inputs.astype(jnp.float32), axis=1)
    onehot = jax.nn.one_hot(targets, num_classes, dtype=jnp.float32)
    t = (1.0 - epsilon) * onehot + epsilon / num_classes
    return (-t * log_probs).mean(0).sum()


if __name__ == "__main__":
    key = jax.random.PRNGKey(0)
    k1, k2, k3, k4 = jax.random.split(key, 4)

    # Case 1: small shape consistent with the module (batch=16, 32 classes).
    B, K = 16, NUM_CLASSES
    inputs = jax.random.normal(k1, (B, K), dtype=jnp.float32)
    targets = jax.random.randint(k2, (B,), 0, K, dtype=jnp.int32)
    loss = jax.block_until_ready(cross_entropy_label_smooth(inputs, targets))
    ref = _reference(inputs, targets, K)
    assert jnp.allclose(loss, ref, rtol=1e-4, atol=1e-4), (loss, ref)

    # Case 1b: also exercise the boolean-fold (v5e-style) one-hot path.
    loss_f = jax.block_until_ready(
        cross_entropy_label_smooth(inputs, targets, mxu_onehot=False))
    assert jnp.allclose(loss_f, ref, rtol=1e-4, atol=1e-4), (loss_f, ref)

    # Case 2: multi-tile parallel grid, pl.when-masked ragged last tile, and a
    # batch that is not a multiple of the packing factor (tiny XLA tail path).
    B2 = 1002
    inputs2 = jax.random.normal(k3, (B2, K), dtype=jnp.float32)
    targets2 = jax.random.randint(k4, (B2,), 0, K, dtype=jnp.int32)
    loss2 = jax.block_until_ready(
        cross_entropy_label_smooth(inputs2, targets2, max_tile_rows=64))
    ref2 = _reference(inputs2, targets2, K)
    assert jnp.allclose(loss2, ref2, rtol=1e-4, atol=1e-4), (loss2, ref2)

    print("KERNEL_OK")
</pallas_src>

<mosaic_0001>
module attributes {stable_mosaic.version = 11 : i64} {
  func.func @_ce_ls_kernel(%arg0: i32, %arg1: memref<16x128xf32, #tpu.memory_space<vmem>>, %arg2: memref<16x16xbf16, #tpu.memory_space<vmem>>, %arg3: memref<128x128xbf16, #tpu.memory_space<vmem>>, %arg4: memref<8x128xf32, #tpu.memory_space<vmem>>) attributes {dimension_semantics = [#tpu.dimension_semantics<parallel>], iteration_bounds = array<i64: 1>, scalar_prefetch = 0 : i64, scratch_operands = 0 : i64, tpu.core_type = #tpu.core_type<tc>, window_params = [{transform_indices = @transform_0, window_bounds = array<i64: 16, 128>}, {transform_indices = @transform_1, window_bounds = array<i64: 16, 16>}, {pipeline_mode = #tpu.pipeline_mode<synchronous>, transform_indices = @transform_2, window_bounds = array<i64: 128, 128>}, {transform_indices = @transform_3, window_bounds = array<i64: 8, 128>}]} {
    %c0 = arith.constant 0 : index
    %c0_0 = arith.constant 0 : index
    %0 = vector.load %arg1[%c0, %c0_0] : memref<16x128xf32, #tpu.memory_space<vmem>>, vector<16x128xf32>
    %cst = arith.constant dense<0xFF800000> : vector<16xf32>
    %1 = vector.multi_reduction <maximumf>, %0, %cst [1] : vector<16x128xf32> to vector<16xf32>
    %2 = vector.shape_cast %1 : vector<16xf32> to vector<16x1xf32>
    %3 = vector.broadcast %2 : vector<16x1xf32> to vector<16x128xf32>
    %4 = arith.subf %0, %3 : vector<16x128xf32>
    %5 = math.exp %4 : vector<16x128xf32>
    %6 = arith.truncf %5 : vector<16x128xf32> to vector<16x128xbf16>
    %7 = arith.extf %6 : vector<16x128xbf16> to vector<16x128xf32>
    %8 = arith.subf %5, %7 : vector<16x128xf32>
    %9 = arith.truncf %8 : vector<16x128xf32> to vector<16x128xbf16>
    %c0_1 = arith.constant 0 : index
    %c0_2 = arith.constant 0 : index
    %10 = vector.load %arg3[%c0_1, %c0_2] : memref<128x128xbf16, #tpu.memory_space<vmem>>, vector<128x128xbf16>
    %cst_3 = arith.constant dense<0.000000e+00> : vector<16x128xf32>
    %11 = tpu.matmul %6, %10, %cst_3 {dimension_numbers = #tpu.dot_dimension_numbers<[1], [0], [0], [1], [0, 0, 1, 1], [], []>} : vector<16x128xbf16>, vector<128x128xbf16>, vector<16x128xf32> -> vector<16x128xf32>
    %cst_4 = arith.constant dense<0.000000e+00> : vector<16x128xf32>
    %12 = tpu.matmul %9, %10, %cst_4 {dimension_numbers = #tpu.dot_dimension_numbers<[1], [0], [0], [1], [0, 0, 1, 1], [], []>} : vector<16x128xbf16>, vector<128x128xbf16>, vector<16x128xf32> -> vector<16x128xf32>
    %13 = arith.addf %11, %12 : vector<16x128xf32>
    %14 = math.log %13 : vector<16x128xf32>
    %15 = vector.broadcast %2 : vector<16x1xf32> to vector<16x128xf32>
    %16 = arith.addf %15, %14 : vector<16x128xf32>
    %17 = tpu.iota {dimensions = array<i32: 1>} : vector<16x128xi32>
    %c0_5 = arith.constant 0 : index
    %c0_6 = arith.constant 0 : index
    %18 = vector.load %arg2[%c0_5, %c0_6] : memref<16x16xbf16, #tpu.memory_space<vmem>>, vector<16x16xbf16>
    %19 = vector.extract_strided_slice %18 {offsets = [0, 0], sizes = [16, 1], strides = [1, 1]} : vector<16x16xbf16> to vector<16x1xbf16>
    %20 = arith.fptosi %19 : vector<16x1xbf16> to vector<16x1xi32>
    %21 = vector.broadcast %20 : vector<16x1xi32> to vector<16x128xi32>
    %22 = arith.cmpi eq, %17, %21 : vector<16x128xi32>
    %23 = vector.extract_strided_slice %18 {offsets = [0, 1], sizes = [16, 1], strides = [1, 1]} : vector<16x16xbf16> to vector<16x1xbf16>
    %24 = arith.fptosi %23 : vector<16x1xbf16> to vector<16x1xi32>
    %25 = vector.broadcast %24 : vector<16x1xi32> to vector<16x128xi32>
    %26 = arith.cmpi eq, %17, %25 : vector<16x128xi32>
    %27 = arith.ori %22, %26 : vector<16x128xi1>
    %28 = vector.extract_strided_slice %18 {offsets = [0, 2], sizes = [16, 1], strides = [1, 1]} : vector<16x16xbf16> to vector<16x1xbf16>
    %29 = arith.fptosi %28 : vector<16x1xbf16> to vector<16x1xi32>
    %30 = vector.broadcast %29 : vector<16x1xi32> to vector<16x128xi32>
    %31 = arith.cmpi eq, %17, %30 : vector<16x128xi32>
    %32 = arith.ori %27, %31 : vector<16x128xi1>
    %33 = vector.extract_strided_slice %18 {offsets = [0, 3], sizes = [16, 1], strides = [1, 1]} : vector<16x16xbf16> to vector<16x1xbf16>
    %34 = arith.fptosi %33 : vector<16x1xbf16> to vector<16x1xi32>
    %35 = vector.broadcast %34 : vector<16x1xi32> to vector<16x128xi32>
    %36 = arith.cmpi eq, %17, %35 : vector<16x128xi32>
    %37 = arith.ori %32, %36 : vector<16x128xi1>
    %cst_7 = arith.constant 0.000000e+00 : f32
    %38 = vector.broadcast %cst_7 : f32 to vector<16x128xf32>
    %39 = arith.select %37, %0, %38 : vector<16x128xi1>, vector<16x128xf32>
    %cst_8 = arith.constant 3.125000e-02 : f32
    %40 = vector.broadcast %cst_8 : f32 to vector<16x128xf32>
    %41 = arith.mulf %40, %16 : vector<16x128xf32>
    %cst_9 = arith.constant 3.125000e-03 : f32
    %42 = vector.broadcast %cst_9 : f32 to vector<16x128xf32>
    %43 = arith.mulf %42, %0 : vector<16x128xf32>
    %44 = arith.subf %41, %43 : vector<16x128xf32>
    %cst_10 = arith.constant 0.899999976 : f32
    %45 = vector.broadcast %cst_10 : f32 to vector<16x128xf32>
    %46 = arith.mulf %45, %39 : vector<16x128xf32>
    %47 = arith.subf %44, %46 : vector<16x128xf32>
    %c0_i32 = arith.constant 0 : i32
    %48 = arith.cmpi eq, %arg0, %c0_i32 : i32
    %49 = arith.extui %48 : i1 to i32
    %c0_i32_11 = arith.constant 0 : i32
    %50 = arith.cmpi ne, %49, %c0_i32_11 : i32
    scf.if %50 {
      %54 = tpu.iota {dimensions = array<i32: 0>} : vector<16x128xi32>
      %c16_i32 = arith.constant 16 : i32
      %55 = arith.muli %arg0, %c16_i32 : i32
      %56 = vector.broadcast %55 : i32 to vector<16x128xi32>
      %57 = arith.addi %56, %54 : vector<16x128xi32>
      %c4_i32 = arith.constant 4 : i32
      %58 = vector.broadcast %c4_i32 : i32 to vector<16x128xi32>
      %59 = arith.cmpi slt, %57, %58 : vector<16x128xi32>
      %cst_14 = arith.constant 0.000000e+00 : f32
      %60 = vector.broadcast %cst_14 : f32 to vector<16x128xf32>
      %61 = arith.select %59, %47, %60 : vector<16x128xi1>, vector<16x128xf32>
      %62 = vector.shape_cast %61 : vector<16x128xf32> to vector<2x8x128xf32>
      %cst_15 = arith.constant dense<0.000000e+00> : vector<8x128xf32>
      %63 = vector.multi_reduction <add>, %62, %cst_15 [0] : vector<2x8x128xf32> to vector<8x128xf32>
      %c0_16 = arith.constant 0 : index
      %c0_17 = arith.constant 0 : index
      %64 = vector.load %arg4[%c0_16, %c0_17] : memref<8x128xf32, #tpu.memory_space<vmem>>, vector<8x128xf32>
      tpu.vector_store %arg4[%c0_16, %c0_17], %63 {strides = array<i32>} : memref<8x128xf32, #tpu.memory_space<vmem>>, vector<8x128xf32>,
    } else {
    }
    %c0_i32_12 = arith.constant 0 : i32
    %51 = arith.cmpi ne, %arg0, %c0_i32_12 : i32
    %52 = arith.extui %51 : i1 to i32
    %c0_i32_13 = arith.constant 0 : i32
    %53 = arith.cmpi ne, %52, %c0_i32_13 : i32
    scf.if %53 {
      %54 = vector.shape_cast %47 : vector<16x128xf32> to vector<2x8x128xf32>
      %cst_14 = arith.constant dense<0.000000e+00> : vector<8x128xf32>
      %55 = vector.multi_reduction <add>, %54, %cst_14 [0] : vector<2x8x128xf32> to vector<8x128xf32>
      %c0_15 = arith.constant 0 : index
      %c0_16 = arith.constant 0 : index
      %56 = vector.load %arg4[%c0_15, %c0_16] : memref<8x128xf32, #tpu.memory_space<vmem>>, vector<8x128xf32>
      tpu.vector_store %arg4[%c0_15, %c0_16], %55 {strides = array<i32>} : memref<8x128xf32, #tpu.memory_space<vmem>>, vector<8x128xf32>,
    } else {
    }
    return
  }
  func.func @transform_0(%arg0: i32) -> (i32, i32) {
    %c0_i32 = arith.constant 0 : i32
    %c0_i32_0 = arith.constant 0 : i32
    return %arg0, %c0_i32 : i32, i32
  }
  func.func @transform_1(%arg0: i32) -> (i32, i32) {
    %c0_i32 = arith.constant 0 : i32
    %c0_i32_0 = arith.constant 0 : i32
    return %arg0, %c0_i32 : i32, i32
  }
  func.func @transform_2(%arg0: i32) -> (i32, i32) {
    %c0_i32 = arith.constant 0 : i32
    %c0_i32_0 = arith.constant 0 : i32
    %c0_i32_1 = arith.constant 0 : i32
    return %c0_i32, %c0_i32_0 : i32, i32
  }
  func.func @transform_3(%arg0: i32) -> (i32, i32) {
    %c0_i32 = arith.constant 0 : i32
    %c0_i32_0 = arith.constant 0 : i32
    return %arg0, %c0_i32 : i32, i32
  }
}

</mosaic_0001>

<llo_original>
// kernel: tpu_custom_call.1
$region0: #{tpu_custom_call.1}
  #allocation0 [shape = 'u32[]', space=smem, size = 0x4, offset = 0x4, fixed_abs, tag = 'smem constant byte address 0x4 - core index']
  #allocation1 [shape = 'u32[144,128]{1,0:T(1,128)}', space=vmem, size = 0x12000, scoped, tag = 'internal scratch']
  %s0 = inlined_call_operand.hbm [shape: f32[4,128], index: 0, kind: input, shape index: {}]
  %s1 = inlined_call_operand.hbm [shape: bf16[4,16], index: 1, kind: input, shape index: {}]
  %s2 = inlined_call_operand.hbm [shape: bf16[128,128], index: 2, kind: input, shape index: {}]
  %s3 = inlined_call_operand.hbm [shape: f32[8,128], index: 3, kind: output, shape index: {}]
  %s4 = sld [smem:[#allocation0]]
  $region42: #{tpu_custom_call.1} parent=0
    _
  %s6 = ssub.s32 1, %s4
  %s7 = scalar_select 0, %s6, %s4
  $region1: #{tpu_custom_call.1} parent=0
    #allocation2 [shape = 'u8[8192]{0}', space=vmem, size = 0x2000, scoped, tag = 'input window, operand 0, single buffered']
    #allocation3 [shape = 's32[1]{0}', space=sflag, size = 0x4, scoped, tag = 'scoped memory for tpu_custom_call.1']
    #allocation4 [shape = 's32[1]{0}', space=sflag, size = 0x4, scoped, tag = 'scoped memory for tpu_custom_call.1']
    #allocation5 [shape = 'u8[4096]{0}', space=vmem, size = 0x1000, scoped, tag = 'input window, operand 1, single buffered']
    #allocation6 [shape = 's32[1]{0}', space=sflag, size = 0x4, scoped, tag = 'scoped memory for tpu_custom_call.1']
    #allocation7 [shape = 'u8[32768]{0}', space=vmem, size = 0x8000, scoped, tag = 'input window, operand 2, single buffered']
    #allocation8 [shape = 'u8[4096]{0}', space=vmem, size = 0x1000, scoped, tag = 'output window, operand 0, single buffered']
    %8 = vsyncpa [#allocation3], 0
    %9 = vsyncpa [#allocation6], 0
    %10 = vsyncpa [#allocation4], 0
    // Predicated region
    $region2: #{tpu_custom_call.1} parent=1 // pred_check
      _
    $region3: #{tpu_custom_call.1} parent=1 // pred_check_branch
      %12 = sbr.rel (0) target = $region5
    $region4: #{tpu_custom_call.1} parent=1 // pred_region
      %s14 = ssub.s32 256, 64
      %15 = vsyncadd [#allocation3], %s14
      %s16 = sshll.u32 [#allocation2], 4
      %s17 = int_to_ptr.vmem [resolvable:$true] %s16
      %22 = dma.hbm_to_vmem [thread:$0]  %s0, 64, %s17, [#allocation3], 64, 64, 4
    $region5: #{tpu_custom_call.1} parent=1 // pred_fallthru
      _
    // Predicated region
    $region6: #{tpu_custom_call.1} parent=1 // pred_check
      _
    $region7: #{tpu_custom_call.1} parent=1 // pred_check_branch
      %24 = sbr.rel (0) target = $region9
    $region8: #{tpu_custom_call.1} parent=1 // pred_region
      %s26 = ssub.s32 128, 32
      %27 = vsyncadd [#allocation6], %s26
      %s28 = sshll.u32 [#allocation5], 4
      %s29 = int_to_ptr.vmem [resolvable:$true] %s28
      %34 = dma.hbm_to_vmem [thread:$0]  %s1, 32, %s29, [#allocation6], 32, 32, 2
    $region9: #{tpu_custom_call.1} parent=1 // pred_fallthru
      _
    // Predicated region
    $region10: #{tpu_custom_call.1} parent=1 // pred_check
      _
    $region11: #{tpu_custom_call.1} parent=1 // pred_check_branch
      %36 = sbr.rel (0) target = $region13
    $region12: #{tpu_custom_call.1} parent=1 // pred_region
      %s38 = ssub.s32 1024, 1024
      %39 = vsyncadd [#allocation6], %s38
      %s40 = sshll.u32 [#allocation7], 4
      %s41 = int_to_ptr.vmem [resolvable:$true] %s40
      %46 = dma.hbm_to_vmem [thread:$0]  %s2, 1024, %s41, [#allocation6], 64, 64, 4
    $region13: #{tpu_custom_call.1} parent=1 // pred_fallthru
      _
    // Predicated region
    $region14: #{tpu_custom_call.1} parent=1 // pred_check
      _
    $region15: #{tpu_custom_call.1} parent=1 // pred_check_branch
      %48 = sbr.rel (0) target = $region17
    $region16: #{tpu_custom_call.1} parent=1 // pred_region
      %49 = dma.done [#allocation3], 256
    $region17: #{tpu_custom_call.1} parent=1 // pred_fallthru
      _
    // Predicated region
    $region18: #{tpu_custom_call.1} parent=1 // pred_check
      _
    $region19: #{tpu_custom_call.1} parent=1 // pred_check_branch
      %51 = sbr.rel (0) target = $region21
    $region20: #{tpu_custom_call.1} parent=1 // pred_region
      %52 = dma.done [#allocation6], 128
    $region21: #{tpu_custom_call.1} parent=1 // pred_fallthru
      _
    // Predicated region
    $region22: #{tpu_custom_call.1} parent=1 // pred_check
      _
    $region23: #{tpu_custom_call.1} parent=1 // pred_check_branch
      %54 = sbr.rel (0) target = $region25
    $region24: #{tpu_custom_call.1} parent=1 // pred_region
      %55 = dma.done [#allocation6], 1024
    $region25: #{tpu_custom_call.1} parent=1 // pred_fallthru
      _
    %v57 = vld [vmem:[#allocation2] sm:$0xff]
    %v58 = vld [vmem:[#allocation2 + $0x8] sm:$0xff]
    %59 = vmax.xlane.f32.xlu0 %v57
    %v60 = vpop.xlane.xlu0 %59
    %61 = vmax.xlane.f32.xlu0 %v58
    %v62 = vpop.xlane.xlu0 %61
    %v63 = vsub.f32 %v57, %v60
    %v64 = vsub.f32 %v58, %v62
    %v65 = vmul.f32 %v63, 1.442695
    %v66 = vpow.pop %v65
    %v67 = vmul.f32 %v64, 1.442695
    %v68 = vpow.pop %v67
    %v69 = vpack.c.bf16 %v68, %v66
    %v70 = vunpack.c.l.bf16 %v69
    %v71 = vunpack.c.h.bf16 %v69
    %v72 = vsub.f32 %v66, %v70
    %v73 = vsub.f32 %v68, %v71
    %v74 = vpack.c.bf16 %v73, %v72
    %v75 = vld [vmem:[#allocation7] sm:$0xf]
    %v76 = vld [vmem:[#allocation7 + $0x4] sm:$0xf]
    %v77 = vld [vmem:[#allocation7 + $0x8] sm:$0xf]
    %v78 = vld [vmem:[#allocation7 + $0xc] sm:$0xf]
    %v79 = vld [vmem:[#allocation7 + $0x10] sm:$0xf]
    %v80 = vld [vmem:[#allocation7 + $0x14] sm:$0xf]
    %v81 = vld [vmem:[#allocation7 + $0x18] sm:$0xf]
    %v82 = vld [vmem:[#allocation7 + $0x1c] sm:$0xf]
    %v83 = vld [vmem:[#allocation7 + $0x20] sm:$0xf]
    %v84 = vld [vmem:[#allocation7 + $0x24] sm:$0xf]
    %v85 = vld [vmem:[#allocation7 + $0x28] sm:$0xf]
    %v86 = vld [vmem:[#allocation7 + $0x2c] sm:$0xf]
    %v87 = vld [vmem:[#allocation7 + $0x30] sm:$0xf]
    %v88 = vld [vmem:[#allocation7 + $0x34] sm:$0xf]
    %v89 = vld [vmem:[#allocation7 + $0x38] sm:$0xf]
    %v90 = vld [vmem:[#allocation7 + $0x3c] sm:$0xf]
    %v107 = vunpack.c.l.b16 %v75
    %v108 = vunpack.c.l.b16 %v76
    %v109 = vunpack.c.l.b16 %v77
    %v110 = vunpack.c.l.b16 %v78
    %v111 = vunpack.c.l.b16 %v79
    %v112 = vunpack.c.l.b16 %v80
    %v113 = vunpack.c.l.b16 %v81
    %v114 = vunpack.c.l.b16 %v82
    %v115 = vunpack.c.l.b16 %v83
    %v116 = vunpack.c.l.b16 %v84
    %v117 = vunpack.c.l.b16 %v85
    %v118 = vunpack.c.l.b16 %v86
    %v119 = vunpack.c.l.b16 %v87
    %v120 = vunpack.c.l.b16 %v88
    %v121 = vunpack.c.l.b16 %v89
    %v122 = vunpack.c.l.b16 %v90
    %v123 = vpack.c.b16 %v108, %v107
    %v124 = vpack.c.b16 %v110, %v109
    %v125 = vpack.c.b16 %v112, %v111
    %v126 = vpack.c.b16 %v114, %v113
    %v127 = vpack.c.b16 %v116, %v115
    %v128 = vpack.c.b16 %v118, %v117
    %v129 = vpack.c.b16 %v120, %v119
    %v130 = vpack.c.b16 %v122, %v121
    %139 = vmatprep.subr.bf16.mxu0 0
    %140 = vmatpush1.bf16.msra.mxu0 %v130
    %141 = vmatprep.subr.bf16.mxu0 0
    %142 = vmatpush1.bf16.msra.mxu0 %v129
    %143 = vmatprep.subr.bf16.mxu0 0
    %144 = vmatpush1.bf16.msra.mxu0 %v128
    %145 = vmatprep.subr.bf16.mxu0 0
    %146 = vmatpush1.bf16.msra.mxu0 %v127
    %147 = vmatprep.subr.bf16.mxu0 0
    %148 = vmatpush1.bf16.msra.mxu0 %v126
    %149 = vmatprep.subr.bf16.mxu0 0
    %150 = vmatpush1.bf16.msra.mxu0 %v125
    %151 = vmatprep.subr.bf16.mxu0 0
    %152 = vmatpush1.bf16.msra.mxu0 %v124
    %153 = vmatprep.subr.bf16.mxu0 0
    %154 = vmatpush1.bf16.msra.mxu0 %v123
    %155 = vmatprep.subr.bf16.mxu0 0
    %156 = vmatpush2.bf16.msra.mxu0 0
    %157 = vmatprep.subr.bf16.mxu0 0
    %158 = vmatpush2.bf16.msra.mxu0 0
    %159 = vmatprep.subr.bf16.mxu0 0
    %160 = vmatpush2.bf16.msra.mxu0 0
    %161 = vmatprep.subr.bf16.mxu0 0
    %162 = vmatpush2.bf16.msra.mxu0 0
    %163 = vmatprep.subr.bf16.mxu0 0
    %164 = vmatpush2.bf16.msra.mxu0 0
    %165 = vmatprep.subr.bf16.mxu0 0
    %166 = vmatpush2.bf16.msra.mxu0 0
    %167 = vmatprep.subr.bf16.mxu0 0
    %168 = vmatpush2.bf16.msra.mxu0 0
    %169 = vmatprep.subr.bf16.mxu0 0
    %170 = vmatpush2.bf16.msra.mxu0 0
    %171 = vmatprep.mubr.bf16.mxu0 0
    %172 = vmatmul.mubr.bf16.gmra.mxu0 %v74
    %v173 = vpop.f32.mrf.mxu0
    %v174 = vadd.f32 0.0, %v173
    %v175 = vpop.f32.mrf.mxu0
    %v176 = vpop.f32.mrf.mxu0
    %v177 = vadd.f32 0.0, %v176
    %v178 = vpop.f32.mrf.mxu0
    %179 = vdwg.mxu0
    %180 = vmatprep.subr.bf16.mxu0 0
    %181 = vmatpush1.bf16.msra.mxu0 %v130
    %182 = vmatprep.subr.bf16.mxu0 0
    %183 = vmatpush1.bf16.msra.mxu0 %v129
    %184 = vmatprep.subr.bf16.mxu0 0
    %185 = vmatpush1.bf16.msra.mxu0 %v128
    %186 = vmatprep.subr.bf16.mxu0 0
    %187 = vmatpush1.bf16.msra.mxu0 %v127
    %188 = vmatprep.subr.bf16.mxu0 0
    %189 = vmatpush1.bf16.msra.mxu0 %v126
    %190 = vmatprep.subr.bf16.mxu0 0
    %191 = vmatpush1.bf16.msra.mxu0 %v125
    %192 = vmatprep.subr.bf16.mxu0 0
    %193 = vmatpush1.bf16.msra.mxu0 %v124
    %194 = vmatprep.subr.bf16.mxu0 0
    %195 = vmatpush1.bf16.msra.mxu0 %v123
    %196 = vmatprep.subr.bf16.mxu0 0
    %197 = vmatpush2.bf16.msra.mxu0 0
    %198 = vmatprep.subr.bf16.mxu0 0
    %199 = vmatpush2.bf16.msra.mxu0 0
    %200 = vmatprep.subr.bf16.mxu0 0
    %201 = vmatpush2.bf16.msra.mxu0 0
    %202 = vmatprep.subr.bf16.mxu0 0
    %203 = vmatpush2.bf16.msra.mxu0 0
    %204 = vmatprep.subr.bf16.mxu0 0
    %205 = vmatpush2.bf16.msra.mxu0 0
    %206 = vmatprep.subr.bf16.mxu0 0
    %207 = vmatpush2.bf16.msra.mxu0 0
    %208 = vmatprep.subr.bf16.mxu0 0
    %209 = vmatpush2.bf16.msra.mxu0 0
    %210 = vmatprep.subr.bf16.mxu0 0
    %211 = vmatpush2.bf16.msra.mxu0 0
    %212 = vmatprep.mubr.bf16.mxu0 0
    %213 = vmatmul.mubr.bf16.gmra.mxu0 %v69
    %v214 = vpop.f32.mrf.mxu0
    %v215 = vadd.f32 %v174, %v214
    %v216 = vpop.f32.mrf.mxu0
    %v217 = vpop.f32.mrf.mxu0
    %v218 = vadd.f32 %v177, %v217
    %v219 = vpop.f32.mrf.mxu0
    %220 = vdwg.mxu0
    %v221 = vlog2.pop %v215
    %v222 = vmul.f32 %v221, 0.6931472
    %v223 = vlog2.pop %v218
    %v224 = vmul.f32 %v223, 0.6931472
    %v225 = vadd.f32 %v60, %v222
    %v226 = vadd.f32 %v62, %v224
    %v227 = vlaneseq
    %v228 = vand.u32 %v227, 127
    %v229 = vld [vmem:[#allocation5] sm:$0x3]
    %v230 = vld [vmem:[#allocation5 + $0x2] sm:$0x3]
    %v231 = vld [vmem:[#allocation5 + $0x4] sm:$0x3]
    %v232 = vld [vmem:[#allocation5 + $0x6] sm:$0x3]
    %v233 = vunpack.c.l.bf16 %v229
    %v234 = vunpack.c.l.bf16 %v230
    %v235 = vunpack.c.l.bf16 %v231
    %v236 = vunpack.c.l.bf16 %v232
    %v237 = vcvt.f32.s32.to.zero.pseudo %v233
    %v238 = vcvt.f32.s32.to.zero.pseudo %v234
    %v239 = vcvt.f32.s32.to.zero.pseudo %v235
    %v240 = vcvt.f32.s32.to.zero.pseudo %v236
    %241 = vset.pattern.permute.xlu0 0
    %242 = vperm.xlu0 %241, %v237
    %v243 = vpop.permute.xlu0 %242
    %v245 = vunpack.c.l.s4 839922192
    %v246 = vunpack.c.0.s8 %v245
    %v247 = vlaneseq
    %v248 = vshrl.u32 %v247, 7
    %v249 = vsub.s32 %v246, %v248
    %v250 = vrot.slane %v243, %v249
    %251 = vset.pattern.permute.xlu0 0
    %252 = vperm.xlu0 %251, %v238
    %v253 = vpop.permute.xlu0 %252
    %v255 = vunpack.c.l.s4 839922192
    %v256 = vunpack.c.0.s8 %v255
    %v257 = vlaneseq
    %v258 = vshrl.u32 %v257, 7
    %v259 = vsub.s32 %v256, %v258
    %v260 = vrot.slane %v253, %v259
    %261 = vset.pattern.permute.xlu0 0
    %262 = vperm.xlu0 %261, %v239
    %v263 = vpop.permute.xlu0 %262
    %v265 = vunpack.c.l.s4 839922192
    %v266 = vunpack.c.0.s8 %v265
    %v267 = vlaneseq
    %v268 = vshrl.u32 %v267, 7
    %v269 = vsub.s32 %v266, %v268
    %v270 = vrot.slane %v263, %v269
    %271 = vset.pattern.permute.xlu0 0
    %272 = vperm.xlu0 %271, %v240
    %v273 = vpop.permute.xlu0 %272
    %v275 = vunpack.c.l.s4 839922192
    %v276 = vunpack.c.0.s8 %v275
    %v277 = vlaneseq
    %v278 = vshrl.u32 %v277, 7
    %v279 = vsub.s32 %v276, %v278
    %v280 = vrot.slane %v273, %v279
    %v281 = vcombine.low %v250, %v260
    %v282 = vcombine.low %v270, %v280
    %vm283 = vcmp.eq.s32.totalorder %v228, %v281
    %vm284 = vcmp.eq.s32.totalorder %v228, %v282
    %285 = vset.pattern.permute.xlu0 1
    %286 = vperm.xlu0 %285, %v237
    %v287 = vpop.permute.xlu0 %286
    %v289 = vunpack.c.l.s4 839922192
    %v290 = vunpack.c.0.s8 %v289
    %v291 = vlaneseq
    %v292 = vshrl.u32 %v291, 7
    %v293 = vsub.s32 %v290, %v292
    %v294 = vrot.slane %v287, %v293
    %295 = vset.pattern.permute.xlu0 1
    %296 = vperm.xlu0 %295, %v238
    %v297 = vpop.permute.xlu0 %296
    %v299 = vunpack.c.l.s4 839922192
    %v300 = vunpack.c.0.s8 %v299
    %v301 = vlaneseq
    %v302 = vshrl.u32 %v301, 7
    %v303 = vsub.s32 %v300, %v302
    %v304 = vrot.slane %v297, %v303
    %305 = vset.pattern.permute.xlu0 1
    %306 = vperm.xlu0 %305, %v239
    %v307 = vpop.permute.xlu0 %306
    %v309 = vunpack.c.l.s4 839922192
    %v310 = vunpack.c.0.s8 %v309
    %v311 = vlaneseq
    %v312 = vshrl.u32 %v311, 7
    %v313 = vsub.s32 %v310, %v312
    %v314 = vrot.slane %v307, %v313
    %315 = vset.pattern.permute.xlu0 1
    %316 = vperm.xlu0 %315, %v240
    %v317 = vpop.permute.xlu0 %316
    %v319 = vunpack.c.l.s4 839922192
    %v320 = vunpack.c.0.s8 %v319
    %v321 = vlaneseq
    %v322 = vshrl.u32 %v321, 7
    %v323 = vsub.s32 %v320, %v322
    %v324 = vrot.slane %v317, %v323
    %v325 = vcombine.low %v294, %v304
    %v326 = vcombine.low %v314, %v324
    %vm327 = vcmp.eq.s32.totalorder %v228, %v325
    %vm328 = vcmp.eq.s32.totalorder %v228, %v326
    %vm329 = vmor %vm283, %vm327
    %vm330 = vmor %vm284, %vm328
    %331 = vset.pattern.permute.xlu0 2
    %332 = vperm.xlu0 %331, %v237
    %v333 = vpop.permute.xlu0 %332
    %v335 = vunpack.c.l.s4 839922192
    %v336 = vunpack.c.0.s8 %v335
    %v337 = vlaneseq
    %v338 = vshrl.u32 %v337, 7
    %v339 = vsub.s32 %v336, %v338
    %v340 = vrot.slane %v333, %v339
    %341 = vset.pattern.permute.xlu0 2
    %342 = vperm.xlu0 %341, %v238
    %v343 = vpop.permute.xlu0 %342
    %v345 = vunpack.c.l.s4 839922192
    %v346 = vunpack.c.0.s8 %v345
    %v347 = vlaneseq
    %v348 = vshrl.u32 %v347, 7
    %v349 = vsub.s32 %v346, %v348
    %v350 = vrot.slane %v343, %v349
    %351 = vset.pattern.permute.xlu0 2
    %352 = vperm.xlu0 %351, %v239
    %v353 = vpop.permute.xlu0 %352
    %v355 = vunpack.c.l.s4 839922192
    %v356 = vunpack.c.0.s8 %v355
    %v357 = vlaneseq
    %v358 = vshrl.u32 %v357, 7
    %v359 = vsub.s32 %v356, %v358
    %v360 = vrot.slane %v353, %v359
    %361 = vset.pattern.permute.xlu0 2
    %362 = vperm.xlu0 %361, %v240
    %v363 = vpop.permute.xlu0 %362
    %v365 = vunpack.c.l.s4 839922192
    %v366 = vunpack.c.0.s8 %v365
    %v367 = vlaneseq
    %v368 = vshrl.u32 %v367, 7
    %v369 = vsub.s32 %v366, %v368
    %v370 = vrot.slane %v363, %v369
    %v371 = vcombine.low %v340, %v350
    %v372 = vcombine.low %v360, %v370
    %vm373 = vcmp.eq.s32.totalorder %v228, %v371
    %vm374 = vcmp.eq.s32.totalorder %v228, %v372
    %vm375 = vmor %vm329, %vm373
    %vm376 = vmor %vm330, %vm374
    %377 = vset.pattern.permute.xlu0 3
    %378 = vperm.xlu0 %377, %v237
    %v379 = vpop.permute.xlu0 %378
    %v381 = vunpack.c.l.s4 839922192
    %v382 = vunpack.c.0.s8 %v381
    %v383 = vlaneseq
    %v384 = vshrl.u32 %v383, 7
    %v385 = vsub.s32 %v382, %v384
    %v386 = vrot.slane %v379, %v385
    %387 = vset.pattern.permute.xlu0 3
    %388 = vperm.xlu0 %387, %v238
    %v389 = vpop.permute.xlu0 %388
    %v391 = vunpack.c.l.s4 839922192
    %v392 = vunpack.c.0.s8 %v391
    %v393 = vlaneseq
    %v394 = vshrl.u32 %v393, 7
    %v395 = vsub.s32 %v392, %v394
    %v396 = vrot.slane %v389, %v395
    %397 = vset.pattern.permute.xlu0 3
    %398 = vperm.xlu0 %397, %v239
    %v399 = vpop.permute.xlu0 %398
    %v401 = vunpack.c.l.s4 839922192
    %v402 = vunpack.c.0.s8 %v401
    %v403 = vlaneseq
    %v404 = vshrl.u32 %v403, 7
    %v405 = vsub.s32 %v402, %v404
    %v406 = vrot.slane %v399, %v405
    %407 = vset.pattern.permute.xlu0 3
    %408 = vperm.xlu0 %407, %v240
    %v409 = vpop.permute.xlu0 %408
    %v411 = vunpack.c.l.s4 839922192
    %v412 = vunpack.c.0.s8 %v411
    %v413 = vlaneseq
    %v414 = vshrl.u32 %v413, 7
    %v415 = vsub.s32 %v412, %v414
    %v416 = vrot.slane %v409, %v415
    %v417 = vcombine.low %v386, %v396
    %v418 = vcombine.low %v406, %v416
    %vm419 = vcmp.eq.s32.totalorder %v228, %v417
    %vm420 = vcmp.eq.s32.totalorder %v228, %v418
    %vm421 = vmor %vm375, %vm419
    %vm422 = vmor %vm376, %vm420
    %v423 = vsel %vm421, %v57, 0.0
    %v424 = vsel %vm422, %v58, 0.0
    %v425 = vmul.f32 %v225, 0.03125
    %v426 = vmul.f32 %v226, 0.03125
    %v427 = vmul.f32 %v57, 0.003125
    %v428 = vmul.f32 %v58, 0.003125
    %v429 = vsub.f32 %v425, %v427
    %v430 = vsub.f32 %v426, %v428
    %v431 = vmul.f32 %v423, 0.9
    %v432 = vmul.f32 %v424, 0.9
    %v433 = vsub.f32 %v429, %v431
    %v434 = vsub.f32 %v430, %v432
    %p435 = scmp.eq.s32.totalorder 0, 0
    // Predicated region
    $region26: #{tpu_custom_call.1} parent=1 // pred_check
      %p436 = pneg %p435
    $region27: #{tpu_custom_call.1} parent=1 // pred_check_branch
      %438 = sbr.rel (%p436) target = $region29
    $region28: #{tpu_custom_call.1} parent=1 // pred_region
      %v439 = vlaneseq
      %v440 = vshrl.u32 %v439, 7
      %v441 = vadd.s32 %v440, 8
      %s442 = smul.u32 0, 16
      %v443 = vstv %s442
      %v444 = vadd.s32 %v443, %v440
      %v445 = vadd.s32 %v443, %v441
      %vm446 = vcmp.lt.s32.totalorder %v444, 4
      %vm447 = vcmp.lt.s32.totalorder %v445, 4
      %v448 = vsel %vm446, %v433, 0.0
      %v449 = vsel %vm447, %v434, 0.0
      %v450 = vadd.f32 %v448, %v449
      %451 = vst [vmem:[#allocation8] sm:$0xff] %v450
    $region29: #{tpu_custom_call.1} parent=1 // pred_fallthru
      _
    %p452 = scmp.ne.s32.totalorder 0, 0
    // Predicated region
    $region30: #{tpu_custom_call.1} parent=1 // pred_check
      %p453 = pneg %p452
    $region31: #{tpu_custom_call.1} parent=1 // pred_check_branch
      %455 = sbr.rel (%p453) target = $region33
    $region32: #{tpu_custom_call.1} parent=1 // pred_region
      %v456 = vadd.f32 %v433, %v434
      %457 = vst [vmem:[#allocation8] sm:$0xff] %v456
    $region33: #{tpu_custom_call.1} parent=1 // pred_fallthru
      _
    // Predicated region
    $region34: #{tpu_custom_call.1} parent=1 // pred_check
      _
    $region35: #{tpu_custom_call.1} parent=1 // pred_check_branch
      %459 = sbr.rel (0) target = $region37
    $region36: #{tpu_custom_call.1} parent=1 // pred_region
      %s461 = ssub.s32 128, 128
      %462 = vsyncadd [#allocation4], %s461
      %s464 = sshll.u32 [#allocation8], 4
      %s465 = int_to_ptr.vmem [resolvable:$true] %s464
      %467 = dma.vmem_to_hbm [thread:$0]  %s465, 128, %s3, [#allocation4]
    $region37: #{tpu_custom_call.1} parent=1 // pred_fallthru
      _
    // Predicated region
    $region38: #{tpu_custom_call.1} parent=1 // pred_check
      _
    $region39: #{tpu_custom_call.1} parent=1 // pred_check_branch
      %469 = sbr.rel (0) target = $region41
    $region40: #{tpu_custom_call.1} parent=1 // pred_region
      %470 = dma.done [#allocation4], 128
    $region41: #{tpu_custom_call.1} parent=1 // pred_fallthru
      _
    %471 = vsyncpa [#allocation3], 1
    %472 = vsyncpa [#allocation6], 1
    %473 = vsyncpa [#allocation4], 1

</llo_original>
